<compile_context>
chip_gen: v6e
topology: v6e:2x2x1
jax: 0.10.0
libtpu: 0.0.40
codegen_flags: <defaults>
</compile_context>

<pallas_src>
import functools

import jax
import jax.numpy as jnp
from jax import lax
from jax.experimental import pallas as pl
from jax.experimental.pallas import tpu as pltpu

_LANE = 128


def _round_up(x, m):
    return ((x + m - 1) // m) * m


def _ppo_actor_kernel(x_ref, w1_ref, b1_ref, w2_ref, b2_ref, out_ref):
    # x_ref: (TB, n_obs), w1_ref: (H, n_obs), b1_ref: (H, 1),
    # w2_ref: (n_act, H), b2_ref: (n_act, 1), out_ref: (n_act, TB).  All f32.
    x = x_ref[...]

    # ---- hidden layer, transposed: h^T = W1 @ x^T (contract over n_obs) ----
    h_t = lax.dot_general(
        w1_ref[...], x,
        dimension_numbers=(((1,), (1,)), ((), ())),
        preferred_element_type=jnp.float32)                      # (H, TB)
    h_t = jnp.maximum(h_t + b1_ref[...], 0.0)                    # + (H, 1)

    # ---- action head, transposed: logits^T = W2 @ h^T ----
    logits = jnp.dot(w2_ref[...], h_t,
                     preferred_element_type=jnp.float32)         # (n_act, TB)
    logits = logits + b2_ref[...]                                # + (n_act, 1)

    # ---- numerically-stable softmax over the action (sublane) axis ----
    m = jnp.max(logits, axis=0, keepdims=True)                   # (1, TB)
    e = jnp.exp(logits - m)                                      # (n_act, TB)
    denom = jnp.sum(e, axis=0, keepdims=True)                    # (1, TB)
    # Exact reciprocal (approx=False): rows must sum to 1 for PPO ratios.
    out_ref[...] = (e * pl.reciprocal(denom, approx=False)).astype(out_ref.dtype)


def _choose_tiling(B, max_tb):
    """Lane-aligned batch tile aiming for a 1-2 step grid."""
    b_pad_min = _round_up(max(B, 1), _LANE)
    if b_pad_min <= 2 * _LANE:
        return b_pad_min, b_pad_min                 # single grid step
    # Two equal steps: feeds both v7x TensorCores; cap so huge batches still
    # use modest VMEM per tile (TB=8192 -> ~2.5 MiB including intermediates).
    tb = min(_round_up(-(-b_pad_min // 2), _LANE), max_tb)
    b_pad = _round_up(b_pad_min, tb)
    return tb, b_pad


@functools.partial(jax.jit, static_argnames=("max_tb",))
def ppo_actor_forward(x, w1, b1, w2, b2, *, max_tb=8192):
    """PPO_Actor.forward.

    x:  (B, n_obs) f32
    w1: (H, n_obs), b1: (H,)       -- PyTorch nn.Linear (out, in) layout
    w2: (n_act, H), b2: (n_act,)
    returns softmax(relu(x @ w1.T + b1) @ w2.T + b2), shape (B, n_act).
    """
    B, n_obs = x.shape
    H = w1.shape[0]
    n_act = w2.shape[0]

    TB, B_pad = _choose_tiling(B, max_tb)
    if B_pad != B:
        # Zero-padded batch rows: harmless through ReLU/softmax, sliced off
        # below, and they live on the (free) lane axis of every vreg.
        x = jnp.pad(x, ((0, B_pad - B), (0, 0)))

    w1f = w1.astype(jnp.float32)
    w2f = w2.astype(jnp.float32)
    b1c = b1.reshape(H, 1).astype(jnp.float32)
    b2c = b2.reshape(n_act, 1).astype(jnp.float32)

    grid = (B_pad // TB,)
    cost = pl.CostEstimate(
        flops=2 * B_pad * (n_obs * H + H * n_act),
        transcendentals=B_pad * n_act,
        bytes_accessed=(B_pad * n_obs * 4                  # x (f32)
                        + (H * n_obs + n_act * H) * 4      # weights (f32)
                        + (H + n_act) * 4                  # biases (f32)
                        + B_pad * n_act * 4),              # out (f32)
    )

    out_t = pl.pallas_call(
        _ppo_actor_kernel,
        out_shape=jax.ShapeDtypeStruct((n_act, B_pad), jnp.float32),
        grid_spec=pltpu.PrefetchScalarGridSpec(
            num_scalar_prefetch=0,
            grid=grid,
            in_specs=[
                pl.BlockSpec((TB, n_obs), lambda i: (i, 0)),    # x: tiled over batch
                pl.BlockSpec((H, n_obs), lambda i: (0, 0)),     # w1: VMEM-resident
                pl.BlockSpec((H, 1), lambda i: (0, 0)),         # b1
                pl.BlockSpec((n_act, H), lambda i: (0, 0)),     # w2
                pl.BlockSpec((n_act, 1), lambda i: (0, 0)),     # b2
            ],
            out_specs=pl.BlockSpec((n_act, TB), lambda i: (0, i)),  # lane-dense out
        ),
        compiler_params=pltpu.CompilerParams(
            dimension_semantics=("parallel",),     # 2 steps -> one per TC on v7x
        ),
        cost_estimate=cost,
    )(x, w1f, b1c, w2f, b2c)

    # (n_act, B_pad) -> (B, n_act); tiny tensor, pure layout plumbing.
    return out_t[:, :B].T


def init_params(key, n_obs, hidden_units, n_act):
    """nn.Linear-style init U(-1/sqrt(fan_in), 1/sqrt(fan_in)), (out, in) layout."""
    k1, k2, k3, k4 = jax.random.split(key, 4)
    bound1 = 1.0 / jnp.sqrt(jnp.float32(n_obs))
    bound2 = 1.0 / jnp.sqrt(jnp.float32(hidden_units))
    w1 = jax.random.uniform(k1, (hidden_units, n_obs), jnp.float32, -bound1, bound1)
    b1 = jax.random.uniform(k2, (hidden_units,), jnp.float32, -bound1, bound1)
    w2 = jax.random.uniform(k3, (n_act, hidden_units), jnp.float32, -bound2, bound2)
    b2 = jax.random.uniform(k4, (n_act,), jnp.float32, -bound2, bound2)
    return w1, b1, w2, b2


def reference_forward(x, w1, b1, w2, b2):
    h = jnp.maximum(x @ w1.T + b1, 0.0)
    logits = h @ w2.T + b2
    return jax.nn.softmax(logits, axis=-1)


def _check(B, n_obs, hidden_units, n_act, key):
    kx, kp = jax.random.split(key)
    x = jax.random.normal(kx, (B, n_obs), jnp.float32)
    w1, b1, w2, b2 = init_params(kp, n_obs, hidden_units, n_act)

    out = jax.block_until_ready(ppo_actor_forward(x, w1, b1, w2, b2))
    ref = reference_forward(x, w1, b1, w2, b2)

    assert out.shape == (B, n_act)
    # f32 operands throughout; tolerance covers multi-pass bf16 MXU f32 matmuls.
    assert jnp.allclose(out, ref, atol=1e-2, rtol=1e-2), "mismatch vs reference"
    # Exact (non-approx) reciprocal -> tight row-sum check.
    assert jnp.allclose(jnp.sum(out, axis=-1), 1.0, atol=1e-4), \
        "softmax rows must sum to 1"


if __name__ == "__main__":
    key = jax.random.PRNGKey(0)
    k_small, k_large = jax.random.split(key)

    # Small shapes consistent with the module: batch=8, n_obs=16, hidden=32, n_act=8.
    # TODO(synk): at batches this tiny the plain XLA path is cheaper than any kernel;
    # production callers should batch env steps before hitting the Pallas path.
    _check(8, 16, 32, 8, k_small)
    # Larger, non-multiple-of-128 batch exercises padding + the 2-step grid
    # (one step per TensorCore on v7x).
    _check(1000, 16, 32, 8, k_large)

    print("KERNEL_OK")
</pallas_src>

<mosaic_0001>
module attributes {stable_mosaic.version = 11 : i64} {
  func.func @_ppo_actor_kernel(%arg0: i32, %arg1: memref<128x16xf32, #tpu.memory_space<vmem>>, %arg2: memref<32x16xf32, #tpu.memory_space<vmem>>, %arg3: memref<32x1xf32, #tpu.memory_space<vmem>>, %arg4: memref<8x32xf32, #tpu.memory_space<vmem>>, %arg5: memref<8x1xf32, #tpu.memory_space<vmem>>, %arg6: memref<8x128xf32, #tpu.memory_space<vmem>>) attributes {dimension_semantics = [#tpu.dimension_semantics<parallel>], iteration_bounds = array<i64: 1>, scalar_prefetch = 0 : i64, scratch_operands = 0 : i64, tpu.core_type = #tpu.core_type<tc>, window_params = [{transform_indices = @transform_0, window_bounds = array<i64: 128, 16>}, {pipeline_mode = #tpu.pipeline_mode<synchronous>, transform_indices = @transform_1, window_bounds = array<i64: 32, 16>}, {pipeline_mode = #tpu.pipeline_mode<synchronous>, transform_indices = @transform_2, window_bounds = array<i64: 32, 1>}, {pipeline_mode = #tpu.pipeline_mode<synchronous>, transform_indices = @transform_3, window_bounds = array<i64: 8, 32>}, {pipeline_mode = #tpu.pipeline_mode<synchronous>, transform_indices = @transform_4, window_bounds = array<i64: 8, 1>}, {transform_indices = @transform_5, window_bounds = array<i64: 8, 128>}]} {
    %c0 = arith.constant 0 : index
    %c0_0 = arith.constant 0 : index
    %0 = vector.load %arg1[%c0, %c0_0] : memref<128x16xf32, #tpu.memory_space<vmem>>, vector<128x16xf32>
    %c0_1 = arith.constant 0 : index
    %c0_2 = arith.constant 0 : index
    %1 = vector.load %arg2[%c0_1, %c0_2] : memref<32x16xf32, #tpu.memory_space<vmem>>, vector<32x16xf32>
    %cst = arith.constant dense<0.000000e+00> : vector<32x128xf32>
    %2 = tpu.matmul %1, %0, %cst {dimension_numbers = #tpu.dot_dimension_numbers<[1], [1], [0], [0], [0, 0, 1, 0], [], []>} : vector<32x16xf32>, vector<128x16xf32>, vector<32x128xf32> -> vector<32x128xf32>
    %c0_3 = arith.constant 0 : index
    %c0_4 = arith.constant 0 : index
    %3 = vector.load %arg3[%c0_3, %c0_4] : memref<32x1xf32, #tpu.memory_space<vmem>>, vector<32x1xf32>
    %4 = vector.broadcast %3 : vector<32x1xf32> to vector<32x128xf32>
    %5 = arith.addf %2, %4 : vector<32x128xf32>
    %cst_5 = arith.constant 0.000000e+00 : f32
    %6 = vector.broadcast %cst_5 : f32 to vector<32x128xf32>
    %7 = arith.maximumf %5, %6 : vector<32x128xf32>
    %c0_6 = arith.constant 0 : index
    %c0_7 = arith.constant 0 : index
    %8 = vector.load %arg4[%c0_6, %c0_7] : memref<8x32xf32, #tpu.memory_space<vmem>>, vector<8x32xf32>
    %cst_8 = arith.constant dense<0.000000e+00> : vector<8x128xf32>
    %9 = tpu.matmul %8, %7, %cst_8 {dimension_numbers = #tpu.dot_dimension_numbers<[1], [0], [0], [1], [0, 0, 1, 1], [], []>} : vector<8x32xf32>, vector<32x128xf32>, vector<8x128xf32> -> vector<8x128xf32>
    %c0_9 = arith.constant 0 : index
    %c0_10 = arith.constant 0 : index
    %10 = vector.load %arg5[%c0_9, %c0_10] : memref<8x1xf32, #tpu.memory_space<vmem>>, vector<8x1xf32>
    %11 = vector.broadcast %10 : vector<8x1xf32> to vector<8x128xf32>
    %12 = arith.addf %9, %11 : vector<8x128xf32>
    %cst_11 = arith.constant dense<0xFF800000> : vector<128xf32>
    %13 = vector.multi_reduction <maximumf>, %12, %cst_11 [0] : vector<8x128xf32> to vector<128xf32>
    %14 = vector.shape_cast %13 : vector<128xf32> to vector<1x128xf32>
    %15 = vector.broadcast %14 : vector<1x128xf32> to vector<8x128xf32>
    %16 = arith.subf %12, %15 : vector<8x128xf32>
    %17 = math.exp %16 : vector<8x128xf32>
    %cst_12 = arith.constant dense<0.000000e+00> : vector<128xf32>
    %18 = vector.multi_reduction <add>, %17, %cst_12 [0] : vector<8x128xf32> to vector<128xf32>
    %19 = vector.shape_cast %18 : vector<128xf32> to vector<1x128xf32>
    %20 = tpu.reciprocal %19 : vector<1x128xf32> -> vector<1x128xf32>
    %21 = vector.broadcast %20 : vector<1x128xf32> to vector<8x128xf32>
    %22 = arith.mulf %17, %21 : vector<8x128xf32>
    %c0_13 = arith.constant 0 : index
    %c0_14 = arith.constant 0 : index
    %23 = vector.load %arg6[%c0_13, %c0_14] : memref<8x128xf32, #tpu.memory_space<vmem>>, vector<8x128xf32>
    tpu.vector_store %arg6[%c0_13, %c0_14], %22 {strides = array<i32>} : memref<8x128xf32, #tpu.memory_space<vmem>>, vector<8x128xf32>,
    return
  }
  func.func @transform_0(%arg0: i32) -> (i32, i32) {
    %c0_i32 = arith.constant 0 : i32
    %c0_i32_0 = arith.constant 0 : i32
    return %arg0, %c0_i32 : i32, i32
  }
  func.func @transform_1(%arg0: i32) -> (i32, i32) {
    %c0_i32 = arith.constant 0 : i32
    %c0_i32_0 = arith.constant 0 : i32
    %c0_i32_1 = arith.constant 0 : i32
    return %c0_i32, %c0_i32_0 : i32, i32
  }
  func.func @transform_2(%arg0: i32) -> (i32, i32) {
    %c0_i32 = arith.constant 0 : i32
    %c0_i32_0 = arith.constant 0 : i32
    %c0_i32_1 = arith.constant 0 : i32
    return %c0_i32, %c0_i32_0 : i32, i32
  }
  func.func @transform_3(%arg0: i32) -> (i32, i32) {
    %c0_i32 = arith.constant 0 : i32
    %c0_i32_0 = arith.constant 0 : i32
    %c0_i32_1 = arith.constant 0 : i32
    return %c0_i32, %c0_i32_0 : i32, i32
  }
  func.func @transform_4(%arg0: i32) -> (i32, i32) {
    %c0_i32 = arith.constant 0 : i32
    %c0_i32_0 = arith.constant 0 : i32
    %c0_i32_1 = arith.constant 0 : i32
    return %c0_i32, %c0_i32_0 : i32, i32
  }
  func.func @transform_5(%arg0: i32) -> (i32, i32) {
    %c0_i32 = arith.constant 0 : i32
    %c0_i32_0 = arith.constant 0 : i32
    return %c0_i32, %arg0 : i32, i32
  }
}

</mosaic_0001>

<llo_original>
// kernel: ppo_actor_forward.1
$region0: #{ppo_actor_forward.1}
  #allocation0 [shape = 'u32[]', space=smem, size = 0x4, offset = 0x4, fixed_abs, tag = 'smem constant byte address 0x4 - core index']
  #allocation1 [shape = 'u32[144,128]{1,0:T(1,128)}', space=vmem, size = 0x12000, scoped, tag = 'internal scratch']
  %s0 = inlined_call_operand.vmem [shape: f32[128,16], index: 0, kind: input, shape index: {}]
  %s1 = inlined_call_operand.vmem [shape: f32[32,16], index: 1, kind: input, shape index: {}]
  %s2 = inlined_call_operand.vmem [shape: f32[32,1], index: 2, kind: input, shape index: {}]
  %s3 = inlined_call_operand.vmem [shape: f32[8,32], index: 3, kind: input, shape index: {}]
  %s4 = inlined_call_operand.vmem [shape: f32[8,1], index: 4, kind: input, shape index: {}]
  %s5 = inlined_call_operand.vmem [shape: f32[8,128], index: 5, kind: output, shape index: {}]
  %s6 = sld [smem:[#allocation0]]
  $region30: #{ppo_actor_forward.1} parent=0
    _
  %s8 = ssub.s32 1, %s6
  %s9 = scalar_select 0, %s8, %s6
  // Predicated region
  $region2: #{ppo_actor_forward.1} parent=0 // pred_check
    _
  $region3: #{ppo_actor_forward.1} parent=0 // pred_check_branch
    %11 = sbr.rel (0) target = $region5
  $region4: #{ppo_actor_forward.1} parent=0 // pred_region
    _
  $region5: #{ppo_actor_forward.1} parent=0 // pred_fallthru
    _
  // Predicated region
  $region6: #{ppo_actor_forward.1} parent=0 // pred_check
    _
  $region7: #{ppo_actor_forward.1} parent=0 // pred_check_branch
    %13 = sbr.rel (0) target = $region9
  $region8: #{ppo_actor_forward.1} parent=0 // pred_region
    _
  $region9: #{ppo_actor_forward.1} parent=0 // pred_fallthru
    _
  // Predicated region
  $region10: #{ppo_actor_forward.1} parent=0 // pred_check
    _
  $region11: #{ppo_actor_forward.1} parent=0 // pred_check_branch
    %15 = sbr.rel (0) target = $region13
  $region12: #{ppo_actor_forward.1} parent=0 // pred_region
    _
  $region13: #{ppo_actor_forward.1} parent=0 // pred_fallthru
    _
  // Predicated region
  $region14: #{ppo_actor_forward.1} parent=0 // pred_check
    _
  $region15: #{ppo_actor_forward.1} parent=0 // pred_check_branch
    %17 = sbr.rel (0) target = $region17
  $region16: #{ppo_actor_forward.1} parent=0 // pred_region
    _
  $region17: #{ppo_actor_forward.1} parent=0 // pred_fallthru
    _
  // Predicated region
  $region18: #{ppo_actor_forward.1} parent=0 // pred_check
    _
  $region19: #{ppo_actor_forward.1} parent=0 // pred_check_branch
    %19 = sbr.rel (0) target = $region21
  $region20: #{ppo_actor_forward.1} parent=0 // pred_region
    _
  $region21: #{ppo_actor_forward.1} parent=0 // pred_fallthru
    _
  %v20 = vld [vmem:[%s0] sm:$0xff]
  %v21 = vld [vmem:[%s0 + $0x8] sm:$0xff]
  %v22 = vld [vmem:[%s0 + $0x10] sm:$0xff]
  %v23 = vld [vmem:[%s0 + $0x18] sm:$0xff]
  %v24 = vld [vmem:[%s0 + $0x20] sm:$0xff]
  %v25 = vld [vmem:[%s0 + $0x28] sm:$0xff]
  %v26 = vld [vmem:[%s0 + $0x30] sm:$0xff]
  %v27 = vld [vmem:[%s0 + $0x38] sm:$0xff]
  %v28 = vld [vmem:[%s0 + $0x40] sm:$0xff]
  %v29 = vld [vmem:[%s0 + $0x48] sm:$0xff]
  %v30 = vld [vmem:[%s0 + $0x50] sm:$0xff]
  %v31 = vld [vmem:[%s0 + $0x58] sm:$0xff]
  %v32 = vld [vmem:[%s0 + $0x60] sm:$0xff]
  %v33 = vld [vmem:[%s0 + $0x68] sm:$0xff]
  %v34 = vld [vmem:[%s0 + $0x70] sm:$0xff]
  %v35 = vld [vmem:[%s0 + $0x78] sm:$0xff]
  %v36 = vld [vmem:[%s1] sm:$0xff]
  %v37 = vld [vmem:[%s1 + $0x8] sm:$0xff]
  %v38 = vld [vmem:[%s1 + $0x10] sm:$0xff]
  %v39 = vld [vmem:[%s1 + $0x18] sm:$0xff]
  %v40 = vld [vmem:[%s2] sm:$0xff]
  %v41 = vld [vmem:[%s2 + $0x8] sm:$0xff]
  %v42 = vld [vmem:[%s2 + $0x10] sm:$0xff]
  %v43 = vld [vmem:[%s2 + $0x18] sm:$0xff]
  %45 = vset.pattern.permute.xlu0 0
  %46 = vperm.xlu0 %45, %v40
  %v47 = vpop.permute.xlu0 %46
  %50 = vset.pattern.permute.xlu0 0
  %51 = vperm.xlu0 %50, %v41
  %v52 = vpop.permute.xlu0 %51
  %55 = vset.pattern.permute.xlu0 0
  %56 = vperm.xlu0 %55, %v42
  %v57 = vpop.permute.xlu0 %56
  %60 = vset.pattern.permute.xlu0 0
  %61 = vperm.xlu0 %60, %v43
  %v62 = vpop.permute.xlu0 %61
  %vm64 = vcmask 130048
  %v66 = vsel %vm64, %v36, 0
  %v69 = vsel %vm64, %v37, 0
  %v72 = vsel %vm64, %v38, 0
  %v75 = vsel %vm64, %v39, 0
  %v78 = vsel %vm64, %v20, 0
  %v81 = vsel %vm64, %v21, 0
  %v84 = vsel %vm64, %v22, 0
  %v87 = vsel %vm64, %v23, 0
  %v90 = vsel %vm64, %v24, 0
  %v93 = vsel %vm64, %v25, 0
  %v96 = vsel %vm64, %v26, 0
  %v99 = vsel %vm64, %v27, 0
  %v102 = vsel %vm64, %v28, 0
  %v105 = vsel %vm64, %v29, 0
  %v108 = vsel %vm64, %v30, 0
  %v111 = vsel %vm64, %v31, 0
  %v114 = vsel %vm64, %v32, 0
  %v117 = vsel %vm64, %v33, 0
  %v120 = vsel %vm64, %v34, 0
  %v123 = vsel %vm64, %v35, 0
  %125 = vmatprep.subr.mxu0 0.0
  %126 = vmatpush1.xpose.msra.mxu0 %v123
  %127 = vmatprep.subr.mxu0 0.0
  %128 = vmatpush1.xpose.msra.mxu0 %v120
  %129 = vmatprep.subr.mxu0 0.0
  %130 = vmatpush1.xpose.msra.mxu0 %v117
  %131 = vmatprep.subr.mxu0 0.0
  %132 = vmatpush1.xpose.msra.mxu0 %v114
  %133 = vmatprep.subr.mxu0 0.0
  %134 = vmatpush1.xpose.msra.mxu0 %v111
  %135 = vmatprep.subr.mxu0 0.0
  %136 = vmatpush1.xpose.msra.mxu0 %v108
  %137 = vmatprep.subr.mxu0 0.0
  %138 = vmatpush1.xpose.msra.mxu0 %v105
  %139 = vmatprep.subr.mxu0 0.0
  %140 = vmatpush1.xpose.msra.mxu0 %v102
  %141 = vmatprep.subr.mxu0 0.0
  %142 = vmatpush1.xpose.msra.mxu0 %v99
  %143 = vmatprep.subr.mxu0 0.0
  %144 = vmatpush1.xpose.msra.mxu0 %v96
  %145 = vmatprep.subr.mxu0 0.0
  %146 = vmatpush1.xpose.msra.mxu0 %v93
  %147 = vmatprep.subr.mxu0 0.0
  %148 = vmatpush1.xpose.msra.mxu0 %v90
  %149 = vmatprep.subr.mxu0 0.0
  %150 = vmatpush1.xpose.msra.mxu0 %v87
  %151 = vmatprep.subr.mxu0 0.0
  %152 = vmatpush1.xpose.msra.mxu0 %v84
  %153 = vmatprep.subr.mxu0 0.0
  %154 = vmatpush1.xpose.msra.mxu0 %v81
  %155 = vmatprep.subr.mxu0 0.0
  %156 = vmatpush1.xpose.msra.mxu0 %v78
  %157 = vmatprep.subr.mxu0 0.0
  %158 = vmatpush2.xpose.msra.mxu0 0.0
  %159 = vmatprep.subr.mxu0 0.0
  %160 = vmatpush2.xpose.msra.mxu0 0.0
  %161 = vmatprep.subr.mxu0 0.0
  %162 = vmatpush2.xpose.msra.mxu0 0.0
  %163 = vmatprep.subr.mxu0 0.0
  %164 = vmatpush2.xpose.msra.mxu0 0.0
  %165 = vmatprep.subr.mxu0 0.0
  %166 = vmatpush2.xpose.msra.mxu0 0.0
  %167 = vmatprep.subr.mxu0 0.0
  %168 = vmatpush2.xpose.msra.mxu0 0.0
  %169 = vmatprep.subr.mxu0 0.0
  %170 = vmatpush2.xpose.msra.mxu0 0.0
  %171 = vmatprep.subr.mxu0 0.0
  %172 = vmatpush2.xpose.msra.mxu0 0.0
  %173 = vmatprep.subr.mxu0 0.0
  %174 = vmatpush2.xpose.msra.mxu0 0.0
  %175 = vmatprep.subr.mxu0 0.0
  %176 = vmatpush2.xpose.msra.mxu0 0.0
  %177 = vmatprep.subr.mxu0 0.0
  %178 = vmatpush2.xpose.msra.mxu0 0.0
  %179 = vmatprep.subr.mxu0 0.0
  %180 = vmatpush2.xpose.msra.mxu0 0.0
  %181 = vmatprep.subr.mxu0 0.0
  %182 = vmatpush2.xpose.msra.mxu0 0.0
  %183 = vmatprep.subr.mxu0 0.0
  %184 = vmatpush2.xpose.msra.mxu0 0.0
  %185 = vmatprep.subr.mxu0 0.0
  %186 = vmatpush2.xpose.msra.mxu0 0.0
  %187 = vmatprep.subr.mxu0 0.0
  %188 = vmatpush2.xpose.msra.mxu0 0.0
  %189 = vmatprep.mubr.f32.mxu0 0.0
  %190 = vmatmul.mubr.f32.gmra.mxu0 %v66
  %v191 = vpop.f32.mrf.mxu0
  %v192 = vadd.f32 %v47, %v191
  %v193 = vpop.f32.mrf.mxu0
  %194 = vmatprep.mubr.f32.mxu0 0.0
  %195 = vmatmul.mubr.f32.gmra.mxu0 %v69
  %v196 = vpop.f32.mrf.mxu0
  %v197 = vadd.f32 %v52, %v196
  %v198 = vpop.f32.mrf.mxu0
  %199 = vmatprep.mubr.f32.mxu0 0.0
  %200 = vmatmul.mubr.f32.gmra.mxu0 %v72
  %v201 = vpop.f32.mrf.mxu0
  %v202 = vadd.f32 %v57, %v201
  %v203 = vpop.f32.mrf.mxu0
  %204 = vmatprep.mubr.f32.mxu0 0.0
  %205 = vmatmul.mubr.f32.gmra.mxu0 %v75
  %v206 = vpop.f32.mrf.mxu0
  %v207 = vadd.f32 %v62, %v206
  %v208 = vpop.f32.mrf.mxu0
  %209 = vdwg.mxu0
  %v210 = vmax.f32 %v192, 0.0
  %v211 = vmax.f32 %v197, 0.0
  %v212 = vmax.f32 %v202, 0.0
  %v213 = vmax.f32 %v207, 0.0
  %v214 = vld [vmem:[%s3] sm:$0xff]
  %v215 = vld [vmem:[%s4] sm:$0xff]
  %217 = vset.pattern.permute.xlu0 0
  %218 = vperm.xlu0 %217, %v215
  %v219 = vpop.permute.xlu0 %218
  %vm221 = vcmask 261120
  %v223 = vsel %vm221, %v214, 0
  %225 = vmatprep.subr.mxu0 0.0
  %226 = vmatpush1.msra.mxu0 0.0
  %227 = vmatprep.subr.mxu0 0.0
  %228 = vmatpush1.msra.mxu0 0.0
  %229 = vmatprep.subr.mxu0 0.0
  %230 = vmatpush1.msra.mxu0 0.0
  %231 = vmatprep.subr.mxu0 0.0
  %232 = vmatpush1.msra.mxu0 0.0
  %233 = vmatprep.subr.mxu0 0.0
  %234 = vmatpush1.msra.mxu0 0.0
  %235 = vmatprep.subr.mxu0 0.0
  %236 = vmatpush1.msra.mxu0 0.0
  %237 = vmatprep.subr.mxu0 0.0
  %238 = vmatpush1.msra.mxu0 0.0
  %239 = vmatprep.subr.mxu0 0.0
  %240 = vmatpush1.msra.mxu0 0.0
  %241 = vmatprep.subr.mxu0 0.0
  %242 = vmatpush1.msra.mxu0 0.0
  %243 = vmatprep.subr.mxu0 0.0
  %244 = vmatpush1.msra.mxu0 0.0
  %245 = vmatprep.subr.mxu0 0.0
  %246 = vmatpush1.msra.mxu0 0.0
  %247 = vmatprep.subr.mxu0 0.0
  %248 = vmatpush1.msra.mxu0 0.0
  %249 = vmatprep.subr.mxu0 0.0
  %250 = vmatpush1.msra.mxu0 %v213
  %251 = vmatprep.subr.mxu0 0.0
  %252 = vmatpush1.msra.mxu0 %v212
  %253 = vmatprep.subr.mxu0 0.0
  %254 = vmatpush1.msra.mxu0 %v211
  %255 = vmatprep.subr.mxu0 0.0
  %256 = vmatpush1.msra.mxu0 %v210
  %257 = vmatprep.subr.mxu0 0.0
  %258 = vmatpush2.msra.mxu0 0.0
  %259 = vmatprep.subr.mxu0 0.0
  %260 = vmatpush2.msra.mxu0 0.0
  %261 = vmatprep.subr.mxu0 0.0
  %262 = vmatpush2.msra.mxu0 0.0
  %263 = vmatprep.subr.mxu0 0.0
  %264 = vmatpush2.msra.mxu0 0.0
  %265 = vmatprep.subr.mxu0 0.0
  %266 = vmatpush2.msra.mxu0 0.0
  %267 = vmatprep.subr.mxu0 0.0
  %268 = vmatpush2.msra.mxu0 0.0
  %269 = vmatprep.subr.mxu0 0.0
  %270 = vmatpush2.msra.mxu0 0.0
  %271 = vmatprep.subr.mxu0 0.0
  %272 = vmatpush2.msra.mxu0 0.0
  %273 = vmatprep.subr.mxu0 0.0
  %274 = vmatpush2.msra.mxu0 0.0
  %275 = vmatprep.subr.mxu0 0.0
  %276 = vmatpush2.msra.mxu0 0.0
  %277 = vmatprep.subr.mxu0 0.0
  %278 = vmatpush2.msra.mxu0 0.0
  %279 = vmatprep.subr.mxu0 0.0
  %280 = vmatpush2.msra.mxu0 0.0
  %281 = vmatprep.subr.mxu0 0.0
  %282 = vmatpush2.msra.mxu0 0.0
  %283 = vmatprep.subr.mxu0 0.0
  %284 = vmatpush2.msra.mxu0 0.0
  %285 = vmatprep.subr.mxu0 0.0
  %286 = vmatpush2.msra.mxu0 0.0
  %287 = vmatprep.subr.mxu0 0.0
  %288 = vmatpush2.msra.mxu0 0.0
  %289 = vmatprep.mubr.f32.mxu0 0.0
  %290 = vmatmul.mubr.f32.gmra.mxu0 %v223
  %v291 = vpop.f32.mrf.mxu0
  %v292 = vadd.f32 %v219, %v291
  %v293 = vpop.f32.mrf.mxu0
  %294 = vdwg.mxu0
  %v295 = vrot.slane %v292, 4
  %v296 = vmax.f32 %v292, %v295
  %v297 = vrot.slane %v296, 2
  %v298 = vmax.f32 %v296, %v297
  %v299 = vrot.slane %v298, 1
  %v300 = vmax.f32 %v298, %v299
  %v301 = vsub.f32 %v292, %v300
  %v302 = vmul.f32 %v301, 1.442695
  %v303 = vpow.pop %v302
  %v304 = vrot.slane %v303, 4
  %v305 = vadd.f32 %v303, %v304
  %v306 = vrot.slane %v305, 2
  %v307 = vadd.f32 %v305, %v306
  %v308 = vrot.slane %v307, 1
  %v309 = vadd.f32 %v307, %v308
  %v310 = vrcp.pop %v309
  %v311 = vmul.f32 %v303, %v310
  %312 = vst [vmem:[%s5] sm:$0xff] %v311
  // Predicated region
  $region22: #{ppo_actor_forward.1} parent=0 // pred_check
    _
  $region23: #{ppo_actor_forward.1} parent=0 // pred_check_branch
    %314 = sbr.rel (0) target = $region25
  $region24: #{ppo_actor_forward.1} parent=0 // pred_region
    _
  $region25: #{ppo_actor_forward.1} parent=0 // pred_fallthru
    _
  // Predicated region
  $region26: #{ppo_actor_forward.1} parent=0 // pred_check
    _
  $region27: #{ppo_actor_forward.1} parent=0 // pred_check_branch
    %316 = sbr.rel (0) target = $region29
  $region28: #{ppo_actor_forward.1} parent=0 // pred_region
    _
  $region29: #{ppo_actor_forward.1} parent=0 // pred_fallthru
    _

</llo_original>
